<compile_context>
chip_gen: v5e
topology: v5e:2x2
jax: 0.10.0
libtpu: 0.0.40
codegen_flags: <defaults>
</compile_context>

<pallas_src>
import functools

import jax
import jax.numpy as jnp
from jax.experimental import pallas as pl
from jax.experimental.pallas import tpu as pltpu

_LANES = 128
_MAX_BLOCK_ROWS = 4096                 # 2 MiB per f32 input block (sweepable 2048-4096)
_VMEM_LIMIT_BYTES = 32 * 1024 * 1024   # > v5e 16 MiB default, <= every chip's physical VMEM


def _num_tensorcores():
    """Best-effort TensorCores-per-chip (2 on v7x, 1 on v5e/v6e); safe fallback = 1."""
    try:
        info = pltpu.get_tpu_info()
        for attr in ("num_cores", "core_count", "num_tensorcores", "tensorcore_count"):
            n = getattr(info, attr, None)
            if n is not None:
                n = int(n)
                if 1 <= n <= 8:
                    return n
    except Exception:
        pass
    return 1


def _sublane_pack(*dtypes):
    """Row granularity so packed (bf16/int8/bool) input blocks stay layout-clean."""
    pack = 8
    for d in dtypes:
        pack = max(pack, 8 * max(1, 4 // jnp.dtype(d).itemsize))
    return pack


def _mask_l1_kernel(pred_ref, gt_ref, mask_ref, num_out_ref, den_out_ref,
                    num_acc, den_acc, *, rows, block_rows, chunks, mask_from):
    c = pl.program_id(0)   # core / partial-sum slot
    i = pl.program_id(1)   # chunk within this core's block range

    @pl.when(i == 0)
    def _():
        num_acc[...] = jnp.zeros_like(num_acc)
        den_acc[...] = jnp.zeros_like(den_acc)

    p = pred_ref[...].astype(jnp.float32)
    g = gt_ref[...].astype(jnp.float32)
    m = mask_ref[...].astype(jnp.float32)

    num_blk = jnp.abs(p - g) * m
    den_blk = m

    def _accumulate(num_b, den_b):
        # Fold the (block_rows, 128) tile onto vreg-shaped (8, 128) accumulators
        # with plain VPU adds: no per-step cross-lane reduce, no scalar stores.
        num_acc[...] += num_b.reshape(-1, 8, _LANES).sum(axis=0)
        den_acc[...] += den_b.reshape(-1, 8, _LANES).sum(axis=0)

    if mask_from is None:
        _accumulate(num_blk, den_blk)
    else:
        logical_block = c * chunks + i

        @pl.when(logical_block < mask_from)
        def _():
            # Interior blocks: unmasked fast path.
            _accumulate(num_blk, den_blk)

        @pl.when(logical_block >= mask_from)
        def _():
            # Partial last block / clamped-duplicate blocks: row-granular validity
            # (single iota + compare).  Mask the numerator as well so OOB garbage
            # (possibly NaN/Inf) cannot leak via NaN * 0.
            row0 = logical_block * block_rows
            rr = jax.lax.broadcasted_iota(jnp.int32, (block_rows, _LANES), 0)
            valid = rr < (rows - row0)
            _accumulate(jnp.where(valid, num_blk, 0.0),
                        jnp.where(valid, den_blk, 0.0))

    @pl.when(i == pl.num_programs(1) - 1)
    def _():
        num_out_ref[0] = num_acc[...]
        den_out_ref[0] = den_acc[...]


def mask_l1_loss(pred, gt, mask, eps=1e-6):
    """Pallas TPU implementation of (|pred - gt| * mask).sum() / (mask.sum() + eps)."""
    assert pred.shape == gt.shape == mask.shape, "inputs must share a shape"

    total = pred.size
    if total == 0:
        return jnp.asarray(0.0, jnp.float32)   # num = 0, den = eps -> loss = 0

    pack = _sublane_pack(pred.dtype, gt.dtype, mask.dtype)
    align = pack * _LANES
    main_total = (total // align) * align
    tail = total - main_total

    pred_f, gt_f, mask_f = (jnp.ravel(x) for x in (pred, gt, mask))

    # Ragged tail (< pack*128 elements): tiny plain-jnp reduction in the wrapper
    # instead of a full-tensor jnp.pad copy feeding the kernel.
    if tail:
        def _tail(x):
            return jax.lax.slice(x, (main_total,), (total,)).astype(jnp.float32)
        pt, gl, mt = _tail(pred_f), _tail(gt_f), _tail(mask_f)
        num_tail = jnp.sum(jnp.abs(pt - gl) * mt)
        den_tail = jnp.sum(mt)
    else:
        num_tail = jnp.zeros((), jnp.float32)
        den_tail = jnp.zeros((), jnp.float32)

    if main_total == 0:
        # Tensor smaller than one aligned chunk: pure-jnp path (kernel skipped).
        return num_tail / (den_tail + eps)

    rows = main_total // _LANES                       # multiple of `pack`

    # TODO(synk): for bf16/fp8 inputs block_rows could be doubled at equal VMEM bytes.
    block_rows = min(_MAX_BLOCK_ROWS, rows)           # multiple of `pack` either way

    nblocks = pl.cdiv(rows, block_rows)
    ncores = max(1, min(_num_tensorcores(), nblocks))
    chunks = pl.cdiv(nblocks, ncores)
    full_blocks = rows // block_rows                  # blocks containing no invalid rows
    needs_mask = ncores * chunks > full_blocks
    mask_from = full_blocks if needs_mask else None

    def _main2d(x):
        if tail:
            x = jax.lax.slice(x, (0,), (main_total,))
        return x.reshape(rows, _LANES)                # free reshape when tail == 0

    pred2d, gt2d, mask2d = _main2d(pred_f), _main2d(gt_f), _main2d(mask_f)

    in_spec = pl.BlockSpec(
        (block_rows, _LANES),
        # Clamp so overhanging logical blocks re-read the last real block; the
        # in-kernel row mask zeroes their contribution.
        lambda c, i: (jnp.minimum(c * chunks + i, nblocks - 1), 0),
    )
    out_spec = pl.BlockSpec((1, 8, _LANES), lambda c, i: (c, 0, 0))

    bytes_accessed = sum(int(x.size) * jnp.dtype(x.dtype).itemsize
                         for x in (pred2d, gt2d, mask2d))
    bytes_accessed += 2 * ncores * 8 * _LANES * 4

    num_part, den_part = pl.pallas_call(
        functools.partial(_mask_l1_kernel, rows=rows, block_rows=block_rows,
                          chunks=chunks, mask_from=mask_from),
        out_shape=(jax.ShapeDtypeStruct((ncores, 8, _LANES), jnp.float32),
                   jax.ShapeDtypeStruct((ncores, 8, _LANES), jnp.float32)),
        grid_spec=pltpu.PrefetchScalarGridSpec(
            num_scalar_prefetch=0,
            grid=(ncores, chunks),
            in_specs=[in_spec, in_spec, in_spec],
            out_specs=[out_spec, out_spec],
            scratch_shapes=[
                pltpu.VMEM((8, _LANES), jnp.float32),   # num accumulator (1 vreg)
                pltpu.VMEM((8, _LANES), jnp.float32),   # den accumulator (1 vreg)
            ],
        ),
        compiler_params=pltpu.CompilerParams(
            # TODO(synk): on v7x, CORE_PARALLEL / pl.core_map would guarantee the
            # leading axis shards across both TensorCores.
            dimension_semantics=("parallel", "arbitrary"),
            vmem_limit_bytes=_VMEM_LIMIT_BYTES,
        ),
        cost_estimate=pl.CostEstimate(
            flops=5 * int(main_total),
            transcendentals=0,
            bytes_accessed=int(bytes_accessed),
        ),
    )(pred2d, gt2d, mask2d)

    num = jnp.sum(num_part) + num_tail
    den = jnp.sum(den_part) + den_tail
    return num / (den + eps)


if __name__ == "__main__":
    key = jax.random.PRNGKey(0)

    def _ref(pred, gt, mask, eps=1e-6):
        return jnp.sum(jnp.abs(pred - gt) * mask) / (jnp.sum(mask) + eps)

    def _check(shape, k):
        k1, k2, k3 = jax.random.split(k, 3)
        pred = jax.random.uniform(k1, shape, dtype=jnp.float32)
        gt = jax.random.uniform(k2, shape, dtype=jnp.float32)
        mask = (jax.random.uniform(k3, shape) > 0.5).astype(jnp.float32)
        out = mask_l1_loss(pred, gt, mask)
        jax.block_until_ready(out)
        ref = _ref(pred, gt, mask)
        assert jnp.allclose(out, ref, rtol=1e-4, atol=1e-6), (shape, float(out), float(ref))

    keys = jax.random.split(key, 3)
    _check((2, 4, 16, 16), keys[0])       # exact tile: single block, zero-copy path
    _check((2, 3, 17, 19), keys[1])       # ragged: aligned prefix in kernel + jnp tail
    _check((2, 10, 190, 190), keys[2])    # multi-block grid + masked partial last block

    print("KERNEL_OK")
</pallas_src>

<mosaic_0001>
module attributes {stable_mosaic.version = 11 : i64} {
  func.func @_mask_l1_kernel(%arg0: i32, %arg1: i32, %arg2: memref<16x128xf32, #tpu.memory_space<vmem>>, %arg3: memref<16x128xf32, #tpu.memory_space<vmem>>, %arg4: memref<16x128xf32, #tpu.memory_space<vmem>>, %arg5: memref<1x8x128xf32, #tpu.memory_space<vmem>>, %arg6: memref<1x8x128xf32, #tpu.memory_space<vmem>>, %arg7: memref<8x128xf32, #tpu.memory_space<vmem>>, %arg8: memref<8x128xf32, #tpu.memory_space<vmem>>) attributes {dimension_semantics = [#tpu.dimension_semantics<parallel>, #tpu.dimension_semantics<arbitrary>], iteration_bounds = array<i64: 1, 1>, scalar_prefetch = 0 : i64, scratch_operands = 2 : i64, tpu.core_type = #tpu.core_type<tc>, window_params = [{transform_indices = @transform_0, window_bounds = array<i64: 16, 128>}, {transform_indices = @transform_1, window_bounds = array<i64: 16, 128>}, {transform_indices = @transform_2, window_bounds = array<i64: 16, 128>}, {transform_indices = @transform_3, window_bounds = array<i64: 1, 8, 128>}, {transform_indices = @transform_4, window_bounds = array<i64: 1, 8, 128>}]} {
    %c0_i32 = arith.constant 0 : i32
    %0 = arith.cmpi eq, %arg1, %c0_i32 : i32
    %1 = arith.extui %0 : i1 to i32
    %c0_i32_0 = arith.constant 0 : i32
    %2 = arith.cmpi ne, %1, %c0_i32_0 : i32
    scf.if %2 {
      %cst_17 = arith.constant 0.000000e+00 : f32
      %22 = vector.broadcast %cst_17 : f32 to vector<8x128xf32>
      %c0_18 = arith.constant 0 : index
      %c0_19 = arith.constant 0 : index
      %23 = vector.load %arg7[%c0_18, %c0_19] : memref<8x128xf32, #tpu.memory_space<vmem>>, vector<8x128xf32>
      tpu.vector_store %arg7[%c0_18, %c0_19], %22 {strides = array<i32>} : memref<8x128xf32, #tpu.memory_space<vmem>>, vector<8x128xf32>,
      %cst_20 = arith.constant 0.000000e+00 : f32
      %24 = vector.broadcast %cst_20 : f32 to vector<8x128xf32>
      %c0_21 = arith.constant 0 : index
      %c0_22 = arith.constant 0 : index
      %25 = vector.load %arg8[%c0_21, %c0_22] : memref<8x128xf32, #tpu.memory_space<vmem>>, vector<8x128xf32>
      tpu.vector_store %arg8[%c0_21, %c0_22], %24 {strides = array<i32>} : memref<8x128xf32, #tpu.memory_space<vmem>>, vector<8x128xf32>,
    } else {
    }
    %c0 = arith.constant 0 : index
    %c0_1 = arith.constant 0 : index
    %3 = vector.load %arg2[%c0, %c0_1] : memref<16x128xf32, #tpu.memory_space<vmem>>, vector<16x128xf32>
    %c0_2 = arith.constant 0 : index
    %c0_3 = arith.constant 0 : index
    %4 = vector.load %arg3[%c0_2, %c0_3] : memref<16x128xf32, #tpu.memory_space<vmem>>, vector<16x128xf32>
    %c0_4 = arith.constant 0 : index
    %c0_5 = arith.constant 0 : index
    %5 = vector.load %arg4[%c0_4, %c0_5] : memref<16x128xf32, #tpu.memory_space<vmem>>, vector<16x128xf32>
    %6 = arith.subf %3, %4 : vector<16x128xf32>
    %7 = math.absf %6 : vector<16x128xf32>
    %8 = arith.mulf %7, %5 : vector<16x128xf32>
    %c0_6 = arith.constant 0 : index
    %c0_7 = arith.constant 0 : index
    %9 = vector.load %arg7[%c0_6, %c0_7] : memref<8x128xf32, #tpu.memory_space<vmem>>, vector<8x128xf32>
    %10 = vector.shape_cast %8 : vector<16x128xf32> to vector<2x8x128xf32>
    %cst = arith.constant dense<0.000000e+00> : vector<8x128xf32>
    %11 = vector.multi_reduction <add>, %10, %cst [0] : vector<2x8x128xf32> to vector<8x128xf32>
    %12 = arith.addf %9, %11 : vector<8x128xf32>
    %c0_8 = arith.constant 0 : index
    %c0_9 = arith.constant 0 : index
    %13 = vector.load %arg7[%c0_8, %c0_9] : memref<8x128xf32, #tpu.memory_space<vmem>>, vector<8x128xf32>
    tpu.vector_store %arg7[%c0_8, %c0_9], %12 {strides = array<i32>} : memref<8x128xf32, #tpu.memory_space<vmem>>, vector<8x128xf32>,
    %c0_10 = arith.constant 0 : index
    %c0_11 = arith.constant 0 : index
    %14 = vector.load %arg8[%c0_10, %c0_11] : memref<8x128xf32, #tpu.memory_space<vmem>>, vector<8x128xf32>
    %15 = vector.shape_cast %5 : vector<16x128xf32> to vector<2x8x128xf32>
    %cst_12 = arith.constant dense<0.000000e+00> : vector<8x128xf32>
    %16 = vector.multi_reduction <add>, %15, %cst_12 [0] : vector<2x8x128xf32> to vector<8x128xf32>
    %17 = arith.addf %14, %16 : vector<8x128xf32>
    %c0_13 = arith.constant 0 : index
    %c0_14 = arith.constant 0 : index
    %18 = vector.load %arg8[%c0_13, %c0_14] : memref<8x128xf32, #tpu.memory_space<vmem>>, vector<8x128xf32>
    tpu.vector_store %arg8[%c0_13, %c0_14], %17 {strides = array<i32>} : memref<8x128xf32, #tpu.memory_space<vmem>>, vector<8x128xf32>,
    %c0_i32_15 = arith.constant 0 : i32
    %19 = arith.cmpi eq, %arg1, %c0_i32_15 : i32
    %20 = arith.extui %19 : i1 to i32
    %c0_i32_16 = arith.constant 0 : i32
    %21 = arith.cmpi ne, %20, %c0_i32_16 : i32
    scf.if %21 {
      %c0_17 = arith.constant 0 : index
      %c0_18 = arith.constant 0 : index
      %22 = vector.load %arg7[%c0_17, %c0_18] : memref<8x128xf32, #tpu.memory_space<vmem>>, vector<8x128xf32>
      %c0_19 = arith.constant 0 : index
      %c0_20 = arith.constant 0 : index
      %c0_21 = arith.constant 0 : index
      %23 = vector.load %arg5[%c0_19, %c0_20, %c0_21] : memref<1x8x128xf32, #tpu.memory_space<vmem>>, vector<1x8x128xf32>
      %24 = vector.shape_cast %23 : vector<1x8x128xf32> to vector<8x128xf32>
      %25 = vector.shape_cast %22 : vector<8x128xf32> to vector<1x8x128xf32>
      tpu.vector_store %arg5[%c0_19, %c0_20, %c0_21], %25 {strides = array<i32>} : memref<1x8x128xf32, #tpu.memory_space<vmem>>, vector<1x8x128xf32>,
      %c0_22 = arith.constant 0 : index
      %c0_23 = arith.constant 0 : index
      %26 = vector.load %arg8[%c0_22, %c0_23] : memref<8x128xf32, #tpu.memory_space<vmem>>, vector<8x128xf32>
      %c0_24 = arith.constant 0 : index
      %c0_25 = arith.constant 0 : index
      %c0_26 = arith.constant 0 : index
      %27 = vector.load %arg6[%c0_24, %c0_25, %c0_26] : memref<1x8x128xf32, #tpu.memory_space<vmem>>, vector<1x8x128xf32>
      %28 = vector.shape_cast %27 : vector<1x8x128xf32> to vector<8x128xf32>
      %29 = vector.shape_cast %26 : vector<8x128xf32> to vector<1x8x128xf32>
      tpu.vector_store %arg6[%c0_24, %c0_25, %c0_26], %29 {strides = array<i32>} : memref<1x8x128xf32, #tpu.memory_space<vmem>>, vector<1x8x128xf32>,
    } else {
    }
    return
  }
  func.func @transform_0(%arg0: i32, %arg1: i32) -> (i32, i32) {
    %c1_i32 = arith.constant 1 : i32
    %0 = arith.muli %arg0, %c1_i32 : i32
    %1 = arith.addi %0, %arg1 : i32
    %c0_i32 = arith.constant 0 : i32
    %2 = arith.minsi %1, %c0_i32 : i32
    %c0_i32_0 = arith.constant 0 : i32
    %c0_i32_1 = arith.constant 0 : i32
    return %2, %c0_i32_0 : i32, i32
  }
  func.func @transform_1(%arg0: i32, %arg1: i32) -> (i32, i32) {
    %c1_i32 = arith.constant 1 : i32
    %0 = arith.muli %arg0, %c1_i32 : i32
    %1 = arith.addi %0, %arg1 : i32
    %c0_i32 = arith.constant 0 : i32
    %2 = arith.minsi %1, %c0_i32 : i32
    %c0_i32_0 = arith.constant 0 : i32
    %c0_i32_1 = arith.constant 0 : i32
    return %2, %c0_i32_0 : i32, i32
  }
  func.func @transform_2(%arg0: i32, %arg1: i32) -> (i32, i32) {
    %c1_i32 = arith.constant 1 : i32
    %0 = arith.muli %arg0, %c1_i32 : i32
    %1 = arith.addi %0, %arg1 : i32
    %c0_i32 = arith.constant 0 : i32
    %2 = arith.minsi %1, %c0_i32 : i32
    %c0_i32_0 = arith.constant 0 : i32
    %c0_i32_1 = arith.constant 0 : i32
    return %2, %c0_i32_0 : i32, i32
  }
  func.func @transform_3(%arg0: i32, %arg1: i32) -> (i32, i32, i32) {
    %c0_i32 = arith.constant 0 : i32
    %c0_i32_0 = arith.constant 0 : i32
    %c0_i32_1 = arith.constant 0 : i32
    return %arg0, %c0_i32, %c0_i32_0 : i32, i32, i32
  }
  func.func @transform_4(%arg0: i32, %arg1: i32) -> (i32, i32, i32) {
    %c0_i32 = arith.constant 0 : i32
    %c0_i32_0 = arith.constant 0 : i32
    %c0_i32_1 = arith.constant 0 : i32
    return %arg0, %c0_i32, %c0_i32_0 : i32, i32, i32
  }
}

</mosaic_0001>

<llo_original>
// kernel: tpu_custom_call.1
$region0: #{tpu_custom_call.1}
  #allocation0 [shape = 'u32[]', space=smem, size = 0x4, offset = 0x4, fixed_abs, tag = 'smem constant byte address 0x4 - core index']
  #allocation1 [shape = 'u32[72,128]{1,0:T(1,128)}', space=vmem, size = 0x9000, scoped, tag = 'internal scratch']
  #allocation2 [shape = 'f32[8,128]{1,0:T(8,128)}', space=vmem, size = 0x1000, scoped, tag = 'scratch operand']
  #allocation3 [shape = 'f32[8,128]{1,0:T(8,128)}', space=vmem, size = 0x1000, scoped, tag = 'scratch operand']
  %s0 = inlined_call_operand.hbm [shape: f32[16,128], index: 0, kind: input, shape index: {}]
  %s1 = inlined_call_operand.hbm [shape: f32[16,128], index: 1, kind: input, shape index: {}]
  %s2 = inlined_call_operand.hbm [shape: f32[16,128], index: 2, kind: input, shape index: {}]
  %s3 = inlined_call_operand.hbm [shape: f32[1,8,128], index: 3, kind: output, shape index: {0}]
  %s4 = inlined_call_operand.hbm [shape: f32[1,8,128], index: 4, kind: output, shape index: {1}]
  %5 = xla_tuple %s3, %s4
  %s6 = sld [smem:[#allocation0]]
  $region50: #{tpu_custom_call.1} parent=0
    _
  %s8 = ssub.s32 1, %s6
  %s9 = scalar_select 0, %s8, %s6
  $region1: #{tpu_custom_call.1} parent=0
    #allocation4 [shape = 'u8[8192]{0}', space=vmem, size = 0x2000, scoped, tag = 'input window, operand 0, single buffered']
    #allocation5 [shape = 's32[1]{0}', space=sflag, size = 0x4, scoped, tag = 'scoped memory for tpu_custom_call.1']
    #allocation6 [shape = 's32[1]{0}', space=sflag, size = 0x4, scoped, tag = 'scoped memory for tpu_custom_call.1']
    #allocation7 [shape = 'u8[8192]{0}', space=vmem, size = 0x2000, scoped, tag = 'input window, operand 1, single buffered']
    #allocation8 [shape = 's32[1]{0}', space=sflag, size = 0x4, scoped, tag = 'scoped memory for tpu_custom_call.1']
    #allocation9 [shape = 'u8[8192]{0}', space=vmem, size = 0x2000, scoped, tag = 'input window, operand 2, single buffered']
    #allocation10 [shape = 'u8[4096]{0}', space=vmem, size = 0x1000, scoped, tag = 'output window, operand 0, single buffered']
    #allocation11 [shape = 'u8[4096]{0}', space=vmem, size = 0x1000, scoped, tag = 'output window, operand 1, single buffered']
    #allocation12 [shape = 's32[1]{0}', space=sflag, size = 0x4, scoped, tag = 'scoped memory for tpu_custom_call.1']
    %10 = vsyncpa [#allocation5], 0
    %11 = vsyncpa [#allocation8], 0
    %12 = vsyncpa [#allocation6], 0
    %13 = vsyncpa [#allocation12], 0
    // Predicated region
    $region2: #{tpu_custom_call.1} parent=1 // pred_check
      _
    $region3: #{tpu_custom_call.1} parent=1 // pred_check_branch
      %15 = sbr.rel (0) target = $region5
    $region4: #{tpu_custom_call.1} parent=1 // pred_region
      %s16 = sadd.s32 0, 0
      %p17 = scmp.lt.s32.totalorder %s16, 0
      %s18 = scalar_select %p17, %s16, 0
      %s19 = smul.u32 2, %s18
      %21 = vsyncadd [#allocation5], 0
      %s22 = smul.addr %s19, 8
      %s23 = scalar_lea.hbm %s0, %s22
      %s24 = sshll.u32 %s23, 4
      %s25 = int_to_ptr.hbm [resolvable:$true] %s24
      %s26 = sshll.u32 [#allocation4], 4
      %s27 = int_to_ptr.vmem [resolvable:$true] %s26
      %32 = dma.hbm_to_vmem [thread:$0]  %s25, 256, %s27, [#allocation5], 128, 128, 8
    $region5: #{tpu_custom_call.1} parent=1 // pred_fallthru
      _
    // Predicated region
    $region6: #{tpu_custom_call.1} parent=1 // pred_check
      _
    $region7: #{tpu_custom_call.1} parent=1 // pred_check_branch
      %34 = sbr.rel (0) target = $region9
    $region8: #{tpu_custom_call.1} parent=1 // pred_region
      %s35 = sadd.s32 0, 0
      %p36 = scmp.lt.s32.totalorder %s35, 0
      %s37 = scalar_select %p36, %s35, 0
      %s38 = smul.u32 2, %s37
      %40 = vsyncadd [#allocation8], 0
      %s41 = smul.addr %s38, 8
      %s42 = scalar_lea.hbm %s1, %s41
      %s43 = sshll.u32 %s42, 4
      %s44 = int_to_ptr.hbm [resolvable:$true] %s43
      %s45 = sshll.u32 [#allocation7], 4
      %s46 = int_to_ptr.vmem [resolvable:$true] %s45
      %51 = dma.hbm_to_vmem [thread:$0]  %s44, 256, %s46, [#allocation8], 128, 128, 8
    $region9: #{tpu_custom_call.1} parent=1 // pred_fallthru
      _
    // Predicated region
    $region10: #{tpu_custom_call.1} parent=1 // pred_check
      _
    $region11: #{tpu_custom_call.1} parent=1 // pred_check_branch
      %53 = sbr.rel (0) target = $region13
    $region12: #{tpu_custom_call.1} parent=1 // pred_region
      %s54 = sadd.s32 0, 0
      %p55 = scmp.lt.s32.totalorder %s54, 0
      %s56 = scalar_select %p55, %s54, 0
      %s57 = smul.u32 2, %s56
      %59 = vsyncadd [#allocation8], 0
      %s60 = smul.addr %s57, 8
      %s61 = scalar_lea.hbm %s2, %s60
      %s62 = sshll.u32 %s61, 4
      %s63 = int_to_ptr.hbm [resolvable:$true] %s62
      %s64 = sshll.u32 [#allocation9], 4
      %s65 = int_to_ptr.vmem [resolvable:$true] %s64
      %70 = dma.hbm_to_vmem [thread:$0]  %s63, 256, %s65, [#allocation8], 128, 128, 8
    $region13: #{tpu_custom_call.1} parent=1 // pred_fallthru
      _
    // Predicated region
    $region14: #{tpu_custom_call.1} parent=1 // pred_check
      _
    $region15: #{tpu_custom_call.1} parent=1 // pred_check_branch
      %72 = sbr.rel (0) target = $region17
    $region16: #{tpu_custom_call.1} parent=1 // pred_region
      %74 = dma.done [#allocation5], 256
    $region17: #{tpu_custom_call.1} parent=1 // pred_fallthru
      _
    // Predicated region
    $region18: #{tpu_custom_call.1} parent=1 // pred_check
      _
    $region19: #{tpu_custom_call.1} parent=1 // pred_check_branch
      %76 = sbr.rel (0) target = $region21
    $region20: #{tpu_custom_call.1} parent=1 // pred_region
      %78 = dma.done [#allocation8], 256
    $region21: #{tpu_custom_call.1} parent=1 // pred_fallthru
      _
    // Predicated region
    $region22: #{tpu_custom_call.1} parent=1 // pred_check
      _
    $region23: #{tpu_custom_call.1} parent=1 // pred_check_branch
      %80 = sbr.rel (0) target = $region25
    $region24: #{tpu_custom_call.1} parent=1 // pred_region
      %82 = dma.done [#allocation8], 256
    $region25: #{tpu_custom_call.1} parent=1 // pred_fallthru
      _
    %s83 = sadd.s32 0, 0
    %p84 = scmp.lt.s32.totalorder %s83, 0
    %s85 = scalar_select %p84, %s83, 0
    %s86 = smul.u32 2, %s85
    %s87 = sadd.s32 0, 0
    %p88 = scmp.lt.s32.totalorder %s87, 0
    %s89 = scalar_select %p88, %s87, 0
    %s90 = smul.u32 2, %s89
    %s91 = sadd.s32 0, 0
    %p92 = scmp.lt.s32.totalorder %s91, 0
    %s93 = scalar_select %p92, %s91, 0
    %s94 = smul.u32 2, %s93
    %p95 = scmp.eq.s32.totalorder 0, 0
    // Predicated region
    $region26: #{tpu_custom_call.1} parent=1 // pred_check
      %p96 = pneg %p95
    $region27: #{tpu_custom_call.1} parent=1 // pred_check_branch
      %98 = sbr.rel (%p96) target = $region29
    $region28: #{tpu_custom_call.1} parent=1 // pred_region
      %99 = vst [vmem:[#allocation2] sm:$0xff] 0.0
      %100 = vst [vmem:[#allocation3] sm:$0xff] 0.0
    $region29: #{tpu_custom_call.1} parent=1 // pred_fallthru
      _
    %v101 = vld [vmem:[#allocation4] sm:$0xff]
    %v102 = vld [vmem:[#allocation4 + $0x8] sm:$0xff]
    %v103 = vld [vmem:[#allocation7] sm:$0xff]
    %v104 = vld [vmem:[#allocation7 + $0x8] sm:$0xff]
    %v105 = vld [vmem:[#allocation9] sm:$0xff]
    %v106 = vld [vmem:[#allocation9 + $0x8] sm:$0xff]
    %v107 = vsub.f32 %v101, %v103
    %v108 = vsub.f32 %v102, %v104
    %v109 = vand.u32 2147483647, %v107
    %v110 = vand.u32 2147483647, %v108
    %v111 = vmul.f32 %v109, %v105
    %v112 = vmul.f32 %v110, %v106
    %v113 = vld [vmem:[#allocation2] sm:$0xff]
    %v114 = vadd.f32 %v111, %v112
    %v115 = vadd.f32 %v113, %v114
    %116 = vst [vmem:[#allocation2] sm:$0xff] %v115
    %v117 = vld [vmem:[#allocation3] sm:$0xff]
    %v118 = vadd.f32 %v105, %v106
    %v119 = vadd.f32 %v117, %v118
    %120 = vst [vmem:[#allocation3] sm:$0xff] %v119
    // Predicated region
    $region30: #{tpu_custom_call.1} parent=1 // pred_check
      %p121 = pneg %p95
    $region31: #{tpu_custom_call.1} parent=1 // pred_check_branch
      %123 = sbr.rel (%p121) target = $region33
    $region32: #{tpu_custom_call.1} parent=1 // pred_region
      %v124 = vld [vmem:[#allocation2] sm:$0xff]
      %125 = vst [vmem:[#allocation10] sm:$0xff] %v124
      %v126 = vld [vmem:[#allocation3] sm:$0xff]
      %127 = vst [vmem:[#allocation11] sm:$0xff] %v126
    $region33: #{tpu_custom_call.1} parent=1 // pred_fallthru
      _
    // Predicated region
    $region34: #{tpu_custom_call.1} parent=1 // pred_check
      _
    $region35: #{tpu_custom_call.1} parent=1 // pred_check_branch
      %129 = sbr.rel (0) target = $region37
    $region36: #{tpu_custom_call.1} parent=1 // pred_region
      %131 = vsyncadd [#allocation6], 0
      %s133 = sshll.u32 [#allocation10], 4
      %s134 = int_to_ptr.vmem [resolvable:$true] %s133
      %s135 = sshll.u32 %s3, 4
      %s136 = int_to_ptr.hbm [resolvable:$true] %s135
      %138 = dma.vmem_to_hbm [thread:$0]  %s134, 128, %s136, [#allocation6]
    $region37: #{tpu_custom_call.1} parent=1 // pred_fallthru
      _
    // Predicated region
    $region38: #{tpu_custom_call.1} parent=1 // pred_check
      _
    $region39: #{tpu_custom_call.1} parent=1 // pred_check_branch
      %140 = sbr.rel (0) target = $region41
    $region40: #{tpu_custom_call.1} parent=1 // pred_region
      %142 = vsyncadd [#allocation12], 0
      %s144 = sshll.u32 [#allocation11], 4
      %s145 = int_to_ptr.vmem [resolvable:$true] %s144
      %s146 = sshll.u32 %s4, 4
      %s147 = int_to_ptr.hbm [resolvable:$true] %s146
      %149 = dma.vmem_to_hbm [thread:$0]  %s145, 128, %s147, [#allocation12]
    $region41: #{tpu_custom_call.1} parent=1 // pred_fallthru
      _
    // Predicated region
    $region42: #{tpu_custom_call.1} parent=1 // pred_check
      _
    $region43: #{tpu_custom_call.1} parent=1 // pred_check_branch
      %151 = sbr.rel (0) target = $region45
    $region44: #{tpu_custom_call.1} parent=1 // pred_region
      %153 = dma.done [#allocation6], 128
    $region45: #{tpu_custom_call.1} parent=1 // pred_fallthru
      _
    // Predicated region
    $region46: #{tpu_custom_call.1} parent=1 // pred_check
      _
    $region47: #{tpu_custom_call.1} parent=1 // pred_check_branch
      %155 = sbr.rel (0) target = $region49
    $region48: #{tpu_custom_call.1} parent=1 // pred_region
      %157 = dma.done [#allocation12], 128
    $region49: #{tpu_custom_call.1} parent=1 // pred_fallthru
      _
    %158 = vsyncpa [#allocation5], 1
    %159 = vsyncpa [#allocation8], 1
    %160 = vsyncpa [#allocation6], 1
    %161 = vsyncpa [#allocation12], 1

</llo_original>
